<compile_context>
chip_gen: v7x
topology: tpu7x:2x2x1
jax: 0.10.0
libtpu: 0.0.40
codegen_flags: <defaults>
</compile_context>

<pallas_src>
import functools

import jax
import jax.numpy as jnp
from jax.experimental import pallas as pl
from jax.experimental.pallas import tpu as pltpu


def _vmem_working_set_bytes(tb, hw, itemsize):
    in_bytes = 2 * tb * hw * itemsize       # double-buffered input block
    tmp_bytes = 5 * tb * hw * 4             # f32 x, rolled copies, dh, dw (conservative)
    fixed = 2 * hw * 4 + 2 * hw * 4         # mask block + resident accumulator slab
    return in_bytes + tmp_bytes + fixed


def _round_down_to_8(v):
    return max(8, (v // 8) * 8)


def _tv1_kernel(mask_ref, x_ref, acc_ref, *, n, tb, w, hw,
                steps_per_core, need_tail_mask):
    # mask_ref: (2, hw)  f32. Row 0: h-diff validity (i < hw - w),
    #                          row 1: w-diff validity (col(i) != w - 1).
    # x_ref:    (tb, hw) native dtype — tb flattened (H*W) image planes.
    # acc_ref:  (2, hw)  f32 — this core's lane-wide running partial sums
    #           (row 0: h-direction, row 1: w-direction). Same output block at
    #           every step of the inner "arbitrary" axis, so it stays resident.
    c = pl.program_id(0)
    i = pl.program_id(1)

    @pl.when(i == 0)
    def _init():
        acc_ref[...] = jnp.zeros_like(acc_ref)

    x = x_ref[...]
    if x.dtype.itemsize < 4:
        # TODO(synk): on v6e/v7x the subtract+abs could stay in bf16 (2 elem/lane
        # on the VPU); upcast for portability (v5e has no bf16 VPU, and bf16
        # lane-rotate support is not guaranteed on older toolchains).
        x = x.astype(jnp.float32)

    # Flattened plane index i = row*w + col.  pltpu.roll follows jnp.roll
    # semantics, so roll(x, hw - s, axis=1)[..., i] == x[..., (i + s) % hw]:
    #   h-diff: |x[i + w] - x[i]|, valid for i <  hw - w      (mask row 0)
    #   w-diff: |x[i + 1] - x[i]|, valid for col(i) != w - 1  (mask row 1)
    # Wrapped (invalid) lanes are zeroed by the masks, keeping every operand
    # full-width and tile-aligned (no lane-slice relayout copies).
    xh = pltpu.roll(x, shift=hw - w, axis=1)
    xw = pltpu.roll(x, shift=hw - 1, axis=1)
    dh = jnp.abs(xh - x) * mask_ref[0:1, :]          # (tb, hw) f32
    dw = jnp.abs(xw - x) * mask_ref[1:2, :]          # (tb, hw) f32

    if need_tail_mask:
        # Only steps whose plane range sticks past n pay the row masking.
        g = c * steps_per_core + i                   # unclamped global block idx
        has_invalid_rows = (g + 1) * tb > n

        @pl.when(jnp.logical_not(has_invalid_rows))
        def _full():
            acc_ref[0:1, :] += jnp.sum(dh, axis=0, keepdims=True)
            acc_ref[1:2, :] += jnp.sum(dw, axis=0, keepdims=True)

        @pl.when(has_invalid_rows)
        def _tail():
            row = jax.lax.broadcasted_iota(jnp.int32, (tb, 1), 0) + g * tb
            valid = row < n
            acc_ref[0:1, :] += jnp.sum(jnp.where(valid, dh, 0.0),
                                       axis=0, keepdims=True)
            acc_ref[1:2, :] += jnp.sum(jnp.where(valid, dw, 0.0),
                                       axis=0, keepdims=True)
    else:
        acc_ref[0:1, :] += jnp.sum(dh, axis=0, keepdims=True)
        acc_ref[1:2, :] += jnp.sum(dw, axis=0, keepdims=True)


def tv_loss_type1(x, block_planes=None):
    """x: (B, C, H, W) float array (any float dtype). Returns scalar TV loss (type=1)."""
    b, c, h, w = x.shape
    n = b * c
    hw = h * w
    itemsize = jnp.dtype(x.dtype).itemsize

    # Flatten to (B*C, H*W): lane-dense layout, native-dtype DMA (no f32 copy).
    xf = x.reshape(n, hw)

    # --- block size: ~4 MiB of input per step, bounded by a VMEM working-set budget.
    if block_planes is None:
        tb = max(1, (4 * 1024 * 1024) // (hw * itemsize))
    else:
        tb = int(block_planes)
    if tb >= n:
        tb = n
    else:
        tb = _round_down_to_8(tb)
    vmem_budget = 40 * 1024 * 1024
    while tb > 8 and _vmem_working_set_bytes(tb, hw, itemsize) > vmem_budget:
        tb = _round_down_to_8(tb // 2)
    # TODO(synk): if a single 8-plane block still exceeds the budget (megapixel
    # planes), H*W itself should be tiled (needs a halo/mask at chunk edges).

    nb = pl.cdiv(n, tb)                        # real blocks along the plane axis
    num_cores = 2 if nb >= 2 else 1            # feed both TCs on v7x; harmless on 1-TC chips
    spc = pl.cdiv(nb, num_cores)               # steps per core
    need_tail_mask = num_cores * spc * tb > n  # can any step see invalid rows?

    if num_cores * spc > nb:
        # Odd block count: the last scheduled step re-reads the final real block;
        # its rows are all >= n and get discarded by the tail mask.
        x_map = lambda ci, ii: (jnp.minimum(ci * spc + ii, nb - 1), 0)
    else:
        x_map = lambda ci, ii: (ci * spc + ii, 0)

    # Full-width validity masks: row 0 kills the wrapped h-diff tail (i >= hw-w),
    # row 1 kills w-diffs that straddle an image row (col == w-1, incl. the wrap).
    j = jnp.arange(hw, dtype=jnp.int32)
    hmask = (j < hw - w).astype(jnp.float32)
    wmask = (j % w != w - 1).astype(jnp.float32)
    masks = jnp.stack([hmask, wmask], axis=0)          # (2, hw), lane-dense

    kernel = functools.partial(
        _tv1_kernel, n=n, tb=tb, w=w, hw=hw,
        steps_per_core=spc, need_tail_mask=need_tail_mask)

    vmem_limit = int(min(
        max(32 * 1024 * 1024,
            _vmem_working_set_bytes(tb, hw, itemsize) + (4 << 20)),
        48 * 1024 * 1024))                              # safe on v7x (64 MiB physical)

    acc = pl.pallas_call(
        kernel,
        out_shape=jax.ShapeDtypeStruct((num_cores, 2, hw), jnp.float32),
        grid=(num_cores, spc),
        in_specs=[
            pl.BlockSpec((2, hw), lambda ci, ii: (0, 0)),   # masks (tiny, resident)
            pl.BlockSpec((tb, hw), x_map),                  # tb planes per step
        ],
        # Per-core accumulator slab; leading dim squeezed so the kernel sees (2, hw).
        out_specs=pl.BlockSpec((None, 2, hw), lambda ci, ii: (ci, 0, 0)),
        compiler_params=pltpu.CompilerParams(
            dimension_semantics=("parallel", "arbitrary"),
            vmem_limit_bytes=vmem_limit,
        ),
        cost_estimate=pl.CostEstimate(
            flops=8 * n * hw,
            transcendentals=0,
            bytes_accessed=n * hw * itemsize + 2 * hw * 4 + num_cores * 2 * hw * 4,
        ),
    )(masks, xf)

    h_tv = jnp.sum(acc[:, 0, :])
    w_tv = jnp.sum(acc[:, 1, :])
    count_h = (h - 1) * w     # same divide-by-zero behavior as the PyTorch module for h==1/w==1
    count_w = h * (w - 1)
    return 2.0 * (h_tv / count_h + w_tv / count_w) / b


def tv_loss_type1_ref(x):
    # Pure-JAX reference mirroring the PyTorch forward (type=1).
    b, c, h, w = x.shape
    x = x.astype(jnp.float32)
    h_tv = jnp.sum(jnp.abs(x[:, :, 1:, :] - x[:, :, : h - 1, :]))
    w_tv = jnp.sum(jnp.abs(x[:, :, :, 1:] - x[:, :, :, : w - 1]))
    count_h = (h - 1) * w
    count_w = h * (w - 1)
    return 2.0 * (h_tv / count_h + w_tv / count_w) / b


if __name__ == "__main__":
    # TVloss(type=1) has no learnable parameters; nothing to initialize.
    key = jax.random.PRNGKey(0)

    # 1) Single block, single core.
    x = jax.random.normal(key, (2, 4, 16, 16), dtype=jnp.float32)
    loss = jax.block_until_ready(tv_loss_type1(x))
    ref = jax.block_until_ready(tv_loss_type1_ref(x))
    assert jnp.allclose(loss, ref, rtol=1e-5, atol=1e-5), (loss, ref)

    # 2) Two-core parallel grid, evenly split blocks (no tail masking).
    x2 = jax.random.normal(jax.random.PRNGKey(1), (4, 4, 16, 16), dtype=jnp.float32)
    loss2 = jax.block_until_ready(tv_loss_type1(x2, block_planes=8))
    ref2 = jax.block_until_ready(tv_loss_type1_ref(x2))
    assert jnp.allclose(loss2, ref2, rtol=1e-5, atol=1e-5), (loss2, ref2)

    # 3) Partial last block (n % tb != 0) -> tail-masked path.
    x3 = jax.random.normal(jax.random.PRNGKey(2), (3, 5, 16, 16), dtype=jnp.float32)
    loss3 = jax.block_until_ready(tv_loss_type1(x3, block_planes=8))
    ref3 = jax.block_until_ready(tv_loss_type1_ref(x3))
    assert jnp.allclose(loss3, ref3, rtol=1e-5, atol=1e-5), (loss3, ref3)

    # 4) Odd block count -> clamped index map + fully-discarded extra step.
    x4 = jax.random.normal(jax.random.PRNGKey(3), (3, 8, 16, 16), dtype=jnp.float32)
    loss4 = jax.block_until_ready(tv_loss_type1(x4, block_planes=8))
    ref4 = jax.block_until_ready(tv_loss_type1_ref(x4))
    assert jnp.allclose(loss4, ref4, rtol=1e-5, atol=1e-5), (loss4, ref4)

    # 5) bf16 input: native-dtype DMA, in-kernel upcast.
    x5 = jax.random.normal(jax.random.PRNGKey(4), (2, 4, 16, 16),
                           dtype=jnp.float32).astype(jnp.bfloat16)
    loss5 = jax.block_until_ready(tv_loss_type1(x5))
    ref5 = jax.block_until_ready(tv_loss_type1_ref(x5))
    assert jnp.allclose(loss5, ref5, rtol=1e-3, atol=1e-3), (loss5, ref5)

    print("KERNEL_OK")
</pallas_src>

<mosaic_0001>
module attributes {stable_mosaic.version = 11 : i64} {
  func.func @_tv1_kernel(%arg0: i32, %arg1: i32, %arg2: memref<2x256xf32, #tpu.memory_space<vmem>>, %arg3: memref<8x256xf32, #tpu.memory_space<vmem>>, %arg4: memref<1x2x256xf32, #tpu.memory_space<vmem>>) attributes {dimension_semantics = [#tpu.dimension_semantics<parallel>, #tpu.dimension_semantics<arbitrary>], iteration_bounds = array<i64: 1, 1>, scalar_prefetch = 0 : i64, scratch_operands = 0 : i64, tpu.core_type = #tpu.core_type<tc>, window_params = [{pipeline_mode = #tpu.pipeline_mode<synchronous>, transform_indices = @transform_0, window_bounds = array<i64: 2, 256>}, {transform_indices = @transform_1, window_bounds = array<i64: 8, 256>}, {transform_indices = @transform_2, window_bounds = array<i64: 1, 2, 256>}]} {
    %c0_i32 = arith.constant 0 : i32
    %0 = arith.cmpi eq, %arg1, %c0_i32 : i32
    %1 = arith.extui %0 : i1 to i32
    %c0_i32_0 = arith.constant 0 : i32
    %2 = arith.cmpi ne, %1, %c0_i32_0 : i32
    scf.if %2 {
      %cst_18 = arith.constant 0.000000e+00 : f32
      %32 = vector.broadcast %cst_18 : f32 to vector<2x256xf32>
      %c0_19 = arith.constant 0 : index
      %c0_20 = arith.constant 0 : index
      %c0_21 = arith.constant 0 : index
      %33 = vector.load %arg4[%c0_19, %c0_20, %c0_21] : memref<1x2x256xf32, #tpu.memory_space<vmem>>, vector<1x2x256xf32>
      %34 = vector.shape_cast %33 : vector<1x2x256xf32> to vector<2x256xf32>
      %35 = vector.shape_cast %32 : vector<2x256xf32> to vector<1x2x256xf32>
      tpu.vector_store %arg4[%c0_19, %c0_20, %c0_21], %35 {strides = array<i32>} : memref<1x2x256xf32, #tpu.memory_space<vmem>>, vector<1x2x256xf32>,
    } else {
    }
    %c0 = arith.constant 0 : index
    %c0_1 = arith.constant 0 : index
    %3 = vector.load %arg3[%c0, %c0_1] : memref<8x256xf32, #tpu.memory_space<vmem>>, vector<8x256xf32>
    %c240_i32 = arith.constant 240 : i32
    %4 = tpu.dynamic_rotate %3 by %c240_i32 dim 1 : vector<8x256xf32>, i32 -> vector<8x256xf32>
    %c255_i32 = arith.constant 255 : i32
    %5 = tpu.dynamic_rotate %3 by %c255_i32 dim 1 : vector<8x256xf32>, i32 -> vector<8x256xf32>
    %6 = arith.subf %4, %3 : vector<8x256xf32>
    %7 = math.absf %6 : vector<8x256xf32>
    %c0_2 = arith.constant 0 : index
    %c0_3 = arith.constant 0 : index
    %8 = vector.load %arg2[%c0_2, %c0_3] : memref<2x256xf32, #tpu.memory_space<vmem>>, vector<1x256xf32>
    %9 = vector.broadcast %8 : vector<1x256xf32> to vector<8x256xf32>
    %10 = arith.mulf %7, %9 : vector<8x256xf32>
    %11 = arith.subf %5, %3 : vector<8x256xf32>
    %12 = math.absf %11 : vector<8x256xf32>
    %c1 = arith.constant 1 : index
    %c0_4 = arith.constant 0 : index
    %13 = vector.load %arg2[%c1, %c0_4] : memref<2x256xf32, #tpu.memory_space<vmem>>, vector<1x256xf32>
    %14 = vector.broadcast %13 : vector<1x256xf32> to vector<8x256xf32>
    %15 = arith.mulf %12, %14 : vector<8x256xf32>
    %c0_5 = arith.constant 0 : index
    %c0_6 = arith.constant 0 : index
    %c0_7 = arith.constant 0 : index
    %16 = vector.load %arg4[%c0_5, %c0_6, %c0_7] : memref<1x2x256xf32, #tpu.memory_space<vmem>>, vector<1x1x256xf32>
    %17 = vector.shape_cast %16 : vector<1x1x256xf32> to vector<1x256xf32>
    %cst = arith.constant dense<0.000000e+00> : vector<256xf32>
    %18 = vector.multi_reduction <add>, %10, %cst [0] : vector<8x256xf32> to vector<256xf32>
    %19 = vector.shape_cast %18 : vector<256xf32> to vector<1x256xf32>
    %20 = arith.addf %17, %19 : vector<1x256xf32>
    %c0_8 = arith.constant 0 : index
    %c0_9 = arith.constant 0 : index
    %c0_10 = arith.constant 0 : index
    %21 = vector.load %arg4[%c0_8, %c0_9, %c0_10] : memref<1x2x256xf32, #tpu.memory_space<vmem>>, vector<1x1x256xf32>
    %22 = vector.shape_cast %21 : vector<1x1x256xf32> to vector<1x256xf32>
    %23 = vector.shape_cast %20 : vector<1x256xf32> to vector<1x1x256xf32>
    tpu.vector_store %arg4[%c0_8, %c0_9, %c0_10], %23 {strides = array<i32>} : memref<1x2x256xf32, #tpu.memory_space<vmem>>, vector<1x1x256xf32>,
    %c0_11 = arith.constant 0 : index
    %c1_12 = arith.constant 1 : index
    %c0_13 = arith.constant 0 : index
    %24 = vector.load %arg4[%c0_11, %c1_12, %c0_13] : memref<1x2x256xf32, #tpu.memory_space<vmem>>, vector<1x1x256xf32>
    %25 = vector.shape_cast %24 : vector<1x1x256xf32> to vector<1x256xf32>
    %cst_14 = arith.constant dense<0.000000e+00> : vector<256xf32>
    %26 = vector.multi_reduction <add>, %15, %cst_14 [0] : vector<8x256xf32> to vector<256xf32>
    %27 = vector.shape_cast %26 : vector<256xf32> to vector<1x256xf32>
    %28 = arith.addf %25, %27 : vector<1x256xf32>
    %c0_15 = arith.constant 0 : index
    %c1_16 = arith.constant 1 : index
    %c0_17 = arith.constant 0 : index
    %29 = vector.load %arg4[%c0_15, %c1_16, %c0_17] : memref<1x2x256xf32, #tpu.memory_space<vmem>>, vector<1x1x256xf32>
    %30 = vector.shape_cast %29 : vector<1x1x256xf32> to vector<1x256xf32>
    %31 = vector.shape_cast %28 : vector<1x256xf32> to vector<1x1x256xf32>
    tpu.vector_store %arg4[%c0_15, %c1_16, %c0_17], %31 {strides = array<i32>} : memref<1x2x256xf32, #tpu.memory_space<vmem>>, vector<1x1x256xf32>,
    return
  }
  func.func @transform_0(%arg0: i32, %arg1: i32) -> (i32, i32) {
    %c0_i32 = arith.constant 0 : i32
    %c0_i32_0 = arith.constant 0 : i32
    %c0_i32_1 = arith.constant 0 : i32
    return %c0_i32, %c0_i32_0 : i32, i32
  }
  func.func @transform_1(%arg0: i32, %arg1: i32) -> (i32, i32) {
    %c1_i32 = arith.constant 1 : i32
    %0 = arith.muli %arg0, %c1_i32 : i32
    %1 = arith.addi %0, %arg1 : i32
    %c0_i32 = arith.constant 0 : i32
    %c0_i32_0 = arith.constant 0 : i32
    return %1, %c0_i32 : i32, i32
  }
  func.func @transform_2(%arg0: i32, %arg1: i32) -> (i32, i32, i32) {
    %c0_i32 = arith.constant 0 : i32
    %c0_i32_0 = arith.constant 0 : i32
    %c0_i32_1 = arith.constant 0 : i32
    return %arg0, %c0_i32, %c0_i32_0 : i32, i32, i32
  }
}

</mosaic_0001>

<llo_original>
// kernel: tpu_custom_call.1
$region0: #{tpu_custom_call.1}
  #allocation0 [shape = 'u32[]', space=smem, size = 0x4, offset = 0x4, fixed_abs, tag = 'smem constant byte address 0x4 - core index']
  #allocation1 [shape = 'u32[144,128]{1,0:T(1,128)}', space=vmem, size = 0x12000, scoped, tag = 'internal scratch']
  %s0 = inlined_call_operand.hbm [shape: f32[2,256], index: 0, kind: input, shape index: {}]
  %s1 = inlined_call_operand.hbm [shape: f32[8,256], index: 1, kind: input, shape index: {}]
  %s2 = inlined_call_operand.hbm [shape: f32[1,2,256], index: 2, kind: output, shape index: {}]
  %s3 = sld [smem:[#allocation0]]
  $region30: #{tpu_custom_call.1} parent=0
    _
  %s5 = ssub.s32 1, %s3
  %s6 = scalar_select 0, %s5, %s3
  $region1: #{tpu_custom_call.1} parent=0
    #allocation2 [shape = 'u8[2048]{0}', space=vmem, size = 0x800, scoped, tag = 'input window, operand 0, single buffered']
    #allocation3 [shape = 's32[1]{0}', space=sflag, size = 0x4, scoped, tag = 'scoped memory for tpu_custom_call.1']
    #allocation4 [shape = 's32[1]{0}', space=sflag, size = 0x4, scoped, tag = 'scoped memory for tpu_custom_call.1']
    #allocation5 [shape = 'u8[8192]{0}', space=vmem, size = 0x2000, scoped, tag = 'input window, operand 1, single buffered']
    #allocation6 [shape = 's32[1]{0}', space=sflag, size = 0x4, scoped, tag = 'scoped memory for tpu_custom_call.1']
    #allocation7 [shape = 'u8[2048]{0}', space=vmem, size = 0x800, scoped, tag = 'output window, operand 0, single buffered']
    %7 = vsyncpa [#allocation3], 0
    %8 = vsyncpa [#allocation6], 0
    %9 = vsyncpa [#allocation4], 0
    // Predicated region
    $region2: #{tpu_custom_call.1} parent=1 // pred_check
      _
    $region3: #{tpu_custom_call.1} parent=1 // pred_check_branch
      %11 = sbr.rel (0) target = $region5
    $region4: #{tpu_custom_call.1} parent=1 // pred_region
      %s13 = ssub.s32 64, 64
      %14 = vsyncadd [#allocation3], %s13
      %s16 = sshll.u32 [#allocation2], 4
      %s17 = int_to_ptr.vmem [resolvable:$true] %s16
      %19 = dma.hbm_to_vmem [thread:$0]  %s0, 64, %s17, [#allocation3]
    $region5: #{tpu_custom_call.1} parent=1 // pred_fallthru
      _
    // Predicated region
    $region6: #{tpu_custom_call.1} parent=1 // pred_check
      _
    $region7: #{tpu_custom_call.1} parent=1 // pred_check_branch
      %21 = sbr.rel (0) target = $region9
    $region8: #{tpu_custom_call.1} parent=1 // pred_region
      %s22 = sadd.s32 0, 0
      %s24 = ssub.s32 256, 256
      %25 = vsyncadd [#allocation6], %s24
      %s26 = smul.addr %s22, 2
      %s27 = smul.addr %s26, 128
      %s28 = scalar_lea.hbm %s1, %s27
      %s30 = sshll.u32 [#allocation5], 4
      %s31 = int_to_ptr.vmem [resolvable:$true] %s30
      %33 = dma.hbm_to_vmem [thread:$0]  %s28, 256, %s31, [#allocation6]
    $region9: #{tpu_custom_call.1} parent=1 // pred_fallthru
      _
    // Predicated region
    $region10: #{tpu_custom_call.1} parent=1 // pred_check
      _
    $region11: #{tpu_custom_call.1} parent=1 // pred_check_branch
      %35 = sbr.rel (0) target = $region13
    $region12: #{tpu_custom_call.1} parent=1 // pred_region
      %36 = dma.done [#allocation3], 64
    $region13: #{tpu_custom_call.1} parent=1 // pred_fallthru
      _
    // Predicated region
    $region14: #{tpu_custom_call.1} parent=1 // pred_check
      _
    $region15: #{tpu_custom_call.1} parent=1 // pred_check_branch
      %38 = sbr.rel (0) target = $region17
    $region16: #{tpu_custom_call.1} parent=1 // pred_region
      %39 = dma.done [#allocation6], 256
    $region17: #{tpu_custom_call.1} parent=1 // pred_fallthru
      _
    %s40 = sadd.s32 0, 0
    %p41 = scmp.eq.s32.totalorder 0, 0
    // Predicated region
    $region18: #{tpu_custom_call.1} parent=1 // pred_check
      %p42 = pneg %p41
    $region19: #{tpu_custom_call.1} parent=1 // pred_check_branch
      %44 = sbr.rel (%p42) target = $region21
    $region20: #{tpu_custom_call.1} parent=1 // pred_region
      %45 = vst [vmem:[#allocation7] sm:$0xf] 0.0
    $region21: #{tpu_custom_call.1} parent=1 // pred_fallthru
      _
    %v46 = vld [vmem:[#allocation5] sm:$0xff]
    %v47 = vld [vmem:[#allocation5 + $0x8] sm:$0xff]
    %48 = vrot.lane.b32.xlu0 %v46, 112
    %v49 = vpop.permute.xlu0 %48
    %50 = vrot.lane.b32.xlu0 %v47, 112
    %v51 = vpop.permute.xlu0 %50
    %v52 = vlaneseq
    %v53 = vand.u32 %v52, 127
    %vm54 = vcmp.lt.s32.totalorder %v53, 112
    %v55 = vsel %vm54, %v49, %v51
    %v56 = vsel %vm54, %v51, %v49
    %57 = vrot.lane.b32.xlu0 %v46, 127
    %v58 = vpop.permute.xlu0 %57
    %59 = vrot.lane.b32.xlu0 %v47, 127
    %v60 = vpop.permute.xlu0 %59
    %vm61 = vcmp.lt.s32.totalorder %v53, 127
    %v62 = vsel %vm61, %v58, %v60
    %v63 = vsel %vm61, %v60, %v58
    %v64 = vsub.f32 %v55, %v46
    %v65 = vsub.f32 %v56, %v47
    %v66 = vand.u32 2147483647, %v64
    %v67 = vand.u32 2147483647, %v65
    %v68 = vld [vmem:[#allocation2] ss:$2 sm:$0x3]
    %v70 = vlaneseq
    %v71 = vshrl.u32 %v70, 7
    %v72 = vsub.s32 0, %v71
    %v73 = vrot.slane %v68, %v72
    %v74 = vlaneseq
    %v75 = vshrl.u32 %v74, 7
    %v76 = vsub.s32 1, %v75
    %v77 = vrot.slane %v68, %v76
    %v80 = vmul.f32 %v66, %v73
    %v81 = vmul.f32 %v67, %v77
    %v82 = vsub.f32 %v62, %v46
    %v83 = vsub.f32 %v63, %v47
    %v84 = vand.u32 2147483647, %v82
    %v85 = vand.u32 2147483647, %v83
    %s86 = scalar_lea.vmem [#allocation2], 1
    %v87 = vld [vmem:[%s86] ss:$2 sm:$0x3]
    %v89 = vlaneseq
    %v90 = vshrl.u32 %v89, 7
    %v91 = vsub.s32 0, %v90
    %v92 = vrot.slane %v87, %v91
    %v93 = vlaneseq
    %v94 = vshrl.u32 %v93, 7
    %v95 = vsub.s32 1, %v94
    %v96 = vrot.slane %v87, %v95
    %v99 = vmul.f32 %v84, %v92
    %v100 = vmul.f32 %v85, %v96
    %v101 = vld [vmem:[#allocation7] ss:$2 sm:$0x3]
    %v102 = vrot.slane %v80, 4
    %v103 = vadd.f32 %v80, %v102
    %v104 = vrot.slane %v103, 2
    %v105 = vadd.f32 %v103, %v104
    %v106 = vrot.slane %v105, 1
    %v107 = vadd.f32 %v105, %v106
    %v108 = vrot.slane %v81, 4
    %v109 = vadd.f32 %v81, %v108
    %v110 = vrot.slane %v109, 2
    %v111 = vadd.f32 %v109, %v110
    %v112 = vrot.slane %v111, 1
    %v113 = vadd.f32 %v111, %v112
    %v116 = vcombine.low %v107, %v113
    %v118 = vunpack.c.l.s4 1966171168
    %v119 = vunpack.c.0.s8 %v118
    %v120 = vlaneseq
    %v121 = vshrl.u32 %v120, 7
    %v122 = vsub.s32 %v119, %v121
    %v123 = vrot.slane %v116, %v122
    %v125 = vunpack.c.l.s4 1966171168
    %v126 = vunpack.c.0.s8 %v125
    %v127 = vlaneseq
    %v128 = vshrl.u32 %v127, 7
    %v129 = vsub.s32 %v126, %v128
    %v130 = vrot.slane %v123, %v129
    %v132 = vadd.f32 %v101, %v130
    %v133 = vlaneseq
    %vm134 = vcmp.ge.s32.totalorder %v133, 0
    %vm135 = vcmp.lt.s32.totalorder %v133, 256
    %vm136 = vmand %vm134, %vm135
    %137 = vst.msk [vmem:[#allocation7] ss:$2 sm:$0x3] %vm136, %v132
    %s138 = scalar_lea.vmem [#allocation7], 1
    %v139 = vld [vmem:[%s138] ss:$2 sm:$0x3]
    %v140 = vrot.slane %v99, 4
    %v141 = vadd.f32 %v99, %v140
    %v142 = vrot.slane %v141, 2
    %v143 = vadd.f32 %v141, %v142
    %v144 = vrot.slane %v143, 1
    %v145 = vadd.f32 %v143, %v144
    %v146 = vrot.slane %v100, 4
    %v147 = vadd.f32 %v100, %v146
    %v148 = vrot.slane %v147, 2
    %v149 = vadd.f32 %v147, %v148
    %v150 = vrot.slane %v149, 1
    %v151 = vadd.f32 %v149, %v150
    %v154 = vcombine.low %v145, %v151
    %v156 = vunpack.c.l.s4 1966171168
    %v157 = vunpack.c.0.s8 %v156
    %v158 = vlaneseq
    %v159 = vshrl.u32 %v158, 7
    %v160 = vsub.s32 %v157, %v159
    %v161 = vrot.slane %v154, %v160
    %v163 = vunpack.c.l.s4 1966171168
    %v164 = vunpack.c.0.s8 %v163
    %v165 = vlaneseq
    %v166 = vshrl.u32 %v165, 7
    %v167 = vsub.s32 %v164, %v166
    %v168 = vrot.slane %v161, %v167
    %v170 = vadd.f32 %v139, %v168
    %171 = vst.msk [vmem:[%s138] ss:$2 sm:$0x3] %vm136, %v170
    // Predicated region
    $region22: #{tpu_custom_call.1} parent=1 // pred_check
      _
    $region23: #{tpu_custom_call.1} parent=1 // pred_check_branch
      %173 = sbr.rel (0) target = $region25
    $region24: #{tpu_custom_call.1} parent=1 // pred_region
      %s175 = ssub.s32 64, 64
      %176 = vsyncadd [#allocation4], %s175
      %s178 = sshll.u32 [#allocation7], 4
      %s179 = int_to_ptr.vmem [resolvable:$true] %s178
      %181 = dma.vmem_to_hbm [thread:$0]  %s179, 64, %s2, [#allocation4]
    $region25: #{tpu_custom_call.1} parent=1 // pred_fallthru
      _
    // Predicated region
    $region26: #{tpu_custom_call.1} parent=1 // pred_check
      _
    $region27: #{tpu_custom_call.1} parent=1 // pred_check_branch
      %183 = sbr.rel (0) target = $region29
    $region28: #{tpu_custom_call.1} parent=1 // pred_region
      %184 = dma.done [#allocation4], 64
    $region29: #{tpu_custom_call.1} parent=1 // pred_fallthru
      _
    %185 = vsyncpa [#allocation3], 1
    %186 = vsyncpa [#allocation6], 1
    %187 = vsyncpa [#allocation4], 1

</llo_original>
